<compile_context>
chip_gen: v5e
topology: v5e:2x2
jax: 0.10.0
libtpu: 0.0.40
codegen_flags: <defaults>
</compile_context>

<pallas_src>
import functools

import jax
import jax.numpy as jnp
from jax.experimental import pallas as pl
from jax.experimental.pallas import tpu as pltpu


def _round_up(x, m):
    return (x + m - 1) // m * m


def _rotate_embed_kernel(ids_ref, emb_hbm, q_ref, out_ref, gbuf, sems, *,
                         tokens_per_block, chunk_rows):
    # ids_ref : (N_pad,) int32 in SMEM (scalar prefetch) — ids for all blocks
    # emb_hbm : (V, Hp) embedding table, left in HBM (memory_space=pl.ANY)
    # q_ref   : (Hp, Hp) rotation matrix, VMEM-resident (constant index_map ->
    #           fetched from HBM once per core, reused for every token block)
    # out_ref : (T, Hp) lane-dense output tile for this token block
    # gbuf    : (T, Hp) VMEM slab for the gathered embedding rows
    # sems    : (2,) DMA semaphores, one per in-flight gather chunk
    i = pl.program_id(0)
    T = tokens_per_block
    C = chunk_rows
    n_chunks = T // C

    def issue_chunk(c):
        # INVARIANT: every copy tracked by sems[...] is exactly one (1, Hp)
        # embedding row, so the same-shaped wait descriptors below match.
        sem = sems.at[c % 2]
        base = i * T + c * C
        for t in range(C):  # fully unrolled descriptor issue
            row = ids_ref[base + t]
            pltpu.make_async_copy(
                emb_hbm.at[pl.ds(row, 1)],
                gbuf.at[pl.ds(c * C + t, 1)],
                sem,
            ).start()

    def wait_chunk(c):
        sem = sems.at[c % 2]
        # Constant-shaped dummy descriptor, hoisted out of the wait loop.
        desc = pltpu.make_async_copy(
            emb_hbm.at[pl.ds(0, 1)], gbuf.at[pl.ds(0, 1)], sem
        )
        for _ in range(C):  # one wait per issued row copy
            desc.wait()

    # In-block software pipeline: chunk c+1's gathers fly while chunk c's rows
    # multiply on the MXU. Scalar id reads happen before any .wait().
    issue_chunk(0)
    for c in range(n_chunks):
        if c + 1 < n_chunks:
            issue_chunk(c + 1)
        wait_chunk(c)
        rows = gbuf[pl.ds(c * C, C), :]
        out_ref[pl.ds(c * C, C), :] = jnp.dot(
            rows, q_ref[...], preferred_element_type=jnp.float32
        ).astype(out_ref.dtype)


def rotate_embed(ids, emb_table, Q, *, block_tokens=256):
    """ids: (B, S) int token ids, emb_table: (V, H), Q: (H, H) -> (B, S, H)."""
    B, S = ids.shape
    V, H = emb_table.shape
    assert Q.shape == (H, H)
    N = B * S
    dtype = emb_table.dtype

    # Lane-dense hidden dim: pad H (table columns + Q rows/cols) to 128.
    Hp = _round_up(H, 128)
    if Hp != H:
        emb_table = jnp.pad(emb_table, ((0, 0), (0, Hp - H)))
        Q = jnp.pad(Q, ((0, Hp - H), (0, Hp - H)))
    Q = Q.astype(dtype)  # make the MXU input dtype explicit

    # Token block: multiple of 8 sublanes, <= block_tokens. Keep >= 2 blocks
    # for N > 128 so both v7x TensorCores get work.
    T = min(block_tokens, _round_up(N, 8))
    if N > 128 and _round_up(N, T) // T < 2:
        T = 128
    N_pad = _round_up(N, T)

    # Gather/compute pipeline chunk size (rows per in-flight DMA batch).
    C = 64 if T % 64 == 0 else T

    flat_ids = jnp.clip(ids.reshape(N).astype(jnp.int32), 0, V - 1)
    if N_pad != N:
        flat_ids = jnp.pad(flat_ids, (0, N_pad - N))  # id 0 is a valid row
    # TODO(synk): for very long sequences, chunk the pallas_call over N so the
    # scalar-prefetched id vector does not blow up SMEM.

    grid = (N_pad // T,)

    # VMEM working set: Q (double-buffered by the default pipeline), gather
    # slab, double-buffered output tile.
    itemsize = jnp.dtype(dtype).itemsize
    vmem_est = (2 * Hp * Hp + T * Hp + 2 * T * Hp) * itemsize
    assert vmem_est < (60 << 20), "Q too large to keep resident in VMEM"
    # TODO(synk): column-tile Q (reintroduce a j grid axis) when H*H*itemsize
    # does not fit the per-generation VMEM budget (v7x: 64 MiB/TC).
    vmem_limit = int(min(max(vmem_est + (8 << 20), 32 << 20), 64 << 20))

    kernel = functools.partial(
        _rotate_embed_kernel, tokens_per_block=T, chunk_rows=C
    )

    out = pl.pallas_call(
        kernel,
        out_shape=jax.ShapeDtypeStruct((N_pad, Hp), dtype),
        grid_spec=pltpu.PrefetchScalarGridSpec(
            num_scalar_prefetch=1,
            grid=grid,
            in_specs=[
                # Embedding table stays in HBM; rows gathered via manual DMA.
                pl.BlockSpec(memory_space=pl.ANY),
                # Whole padded rotation matrix; constant block index =>
                # DMA'd from HBM once and kept resident across token blocks.
                pl.BlockSpec((Hp, Hp), lambda i, ids: (0, 0)),
            ],
            out_specs=pl.BlockSpec((T, Hp), lambda i, ids: (i, 0)),
            scratch_shapes=[
                pltpu.VMEM((T, Hp), dtype),      # gathered embedding rows
                pltpu.SemaphoreType.DMA((2,)),   # per-chunk gather semaphores
            ],
        ),
        compiler_params=pltpu.CompilerParams(
            # Token blocks are independent -> shard across v7x's 2 TensorCores
            # (each grid step is fully self-contained: gather, wait, matmul).
            dimension_semantics=("parallel",),
            vmem_limit_bytes=vmem_limit,
        ),
    )(flat_ids, emb_table, Q)

    return out[:N, :H].reshape(B, S, H)


if __name__ == "__main__":
    # Small shapes consistent with the module: batch=2, seq=8, vocab=64, hidden=32.
    B, S, V, H = 2, 8, 64, 32

    key = jax.random.PRNGKey(0)
    k_emb, k_q, k_ids = jax.random.split(key, 3)

    emb_table = jax.random.normal(k_emb, (V, H), dtype=jnp.float32)
    # A random orthogonal-ish rotation matrix via QR (deterministic).
    Q, _ = jnp.linalg.qr(jax.random.normal(k_q, (H, H), dtype=jnp.float32))

    ids = jax.random.randint(k_ids, (B, S), 0, V, dtype=jnp.int32)

    out = rotate_embed(ids, emb_table, Q)
    out = jax.block_until_ready(out)

    # Reference (plain JAX, float32 — see TODO about float64 above).
    ref = jnp.matmul(
        emb_table[ids].astype(jnp.float32),
        Q.astype(jnp.float32),
        precision=jax.lax.Precision.HIGHEST,
    ).astype(emb_table.dtype)

    assert out.shape == (B, S, H), out.shape
    assert out.dtype == emb_table.dtype, out.dtype
    assert jnp.allclose(out, ref, atol=1e-4, rtol=1e-4), "mismatch vs reference"

    print("KERNEL_OK")
</pallas_src>

<mosaic_0001>
module attributes {stable_mosaic.version = 11 : i64} {
  func.func @_rotate_embed_kernel(%arg0: i32, %arg1: memref<16xi32, #tpu.memory_space<smem>>, %arg2: memref<64x128xf32, #tpu.memory_space<any>>, %arg3: memref<128x128xf32, #tpu.memory_space<vmem>>, %arg4: memref<16x128xf32, #tpu.memory_space<vmem>>, %arg5: memref<16x128xf32, #tpu.memory_space<vmem>>, %arg6: memref<2x!tpu.dma_semaphore, #tpu.memory_space<semaphore_mem>>) attributes {dimension_semantics = [#tpu.dimension_semantics<parallel>], iteration_bounds = array<i64: 1>, scalar_prefetch = 1 : i64, scratch_operands = 2 : i64, tpu.core_type = #tpu.core_type<tc>, window_params = [{}, {pipeline_mode = #tpu.pipeline_mode<synchronous>, transform_indices = @transform_1, window_bounds = array<i64: 128, 128>}, {transform_indices = @transform_2, window_bounds = array<i64: 16, 128>}]} {
    %c16_i32 = arith.constant 16 : i32
    %0 = arith.muli %arg0, %c16_i32 : i32
    %c0_i32 = arith.constant 0 : i32
    %1 = arith.addi %0, %c0_i32 : i32
    %c0_i32_0 = arith.constant 0 : i32
    %2 = arith.addi %1, %c0_i32_0 : i32
    %3 = arith.index_cast %2 : i32 to index
    %4 = memref.load %arg1[%3] : memref<16xi32, #tpu.memory_space<smem>>
    %c0_i32_1 = arith.constant 0 : i32
    %c0_i32_2 = arith.constant 0 : i32
    %5 = tpu.memref_slice %arg2[%4, %c0_i32_2] : memref<64x128xf32, #tpu.memory_space<any>> -> memref<1x128xf32, #tpu.memory_space<any>>
    %c0_i32_3 = arith.constant 0 : i32
    %c0_i32_4 = arith.constant 0 : i32
    %6 = tpu.memref_slice %arg5[%c0_i32_3, %c0_i32_4] : memref<16x128xf32, #tpu.memory_space<vmem>> -> memref<1x128xf32, #tpu.memory_space<vmem>>
    %7 = tpu.memref_slice %arg6[%c0_i32_1] : memref<2x!tpu.dma_semaphore, #tpu.memory_space<semaphore_mem>> -> memref<1x!tpu.dma_semaphore, #tpu.memory_space<semaphore_mem>>
    %8 = tpu.memref_squeeze %7 : memref<1x!tpu.dma_semaphore, #tpu.memory_space<semaphore_mem>> -> memref<!tpu.dma_semaphore, #tpu.memory_space<semaphore_mem>>
    tpu.enqueue_dma source(%5 : memref<1x128xf32, #tpu.memory_space<any>>) target(%6 : memref<1x128xf32, #tpu.memory_space<vmem>>) target_semaphore(%8 : memref<!tpu.dma_semaphore, #tpu.memory_space<semaphore_mem>>)
    %c1_i32 = arith.constant 1 : i32
    %9 = arith.addi %1, %c1_i32 : i32
    %10 = arith.index_cast %9 : i32 to index
    %11 = memref.load %arg1[%10] : memref<16xi32, #tpu.memory_space<smem>>
    %c0_i32_5 = arith.constant 0 : i32
    %c0_i32_6 = arith.constant 0 : i32
    %12 = tpu.memref_slice %arg2[%11, %c0_i32_6] : memref<64x128xf32, #tpu.memory_space<any>> -> memref<1x128xf32, #tpu.memory_space<any>>
    %c1_i32_7 = arith.constant 1 : i32
    %c0_i32_8 = arith.constant 0 : i32
    %13 = tpu.memref_slice %arg5[%c1_i32_7, %c0_i32_8] : memref<16x128xf32, #tpu.memory_space<vmem>> -> memref<1x128xf32, #tpu.memory_space<vmem>>
    %14 = tpu.memref_slice %arg6[%c0_i32_5] : memref<2x!tpu.dma_semaphore, #tpu.memory_space<semaphore_mem>> -> memref<1x!tpu.dma_semaphore, #tpu.memory_space<semaphore_mem>>
    %15 = tpu.memref_squeeze %14 : memref<1x!tpu.dma_semaphore, #tpu.memory_space<semaphore_mem>> -> memref<!tpu.dma_semaphore, #tpu.memory_space<semaphore_mem>>
    tpu.enqueue_dma source(%12 : memref<1x128xf32, #tpu.memory_space<any>>) target(%13 : memref<1x128xf32, #tpu.memory_space<vmem>>) target_semaphore(%15 : memref<!tpu.dma_semaphore, #tpu.memory_space<semaphore_mem>>)
    %c2_i32 = arith.constant 2 : i32
    %16 = arith.addi %1, %c2_i32 : i32
    %17 = arith.index_cast %16 : i32 to index
    %18 = memref.load %arg1[%17] : memref<16xi32, #tpu.memory_space<smem>>
    %c0_i32_9 = arith.constant 0 : i32
    %c0_i32_10 = arith.constant 0 : i32
    %19 = tpu.memref_slice %arg2[%18, %c0_i32_10] : memref<64x128xf32, #tpu.memory_space<any>> -> memref<1x128xf32, #tpu.memory_space<any>>
    %c2_i32_11 = arith.constant 2 : i32
    %c0_i32_12 = arith.constant 0 : i32
    %20 = tpu.memref_slice %arg5[%c2_i32_11, %c0_i32_12] : memref<16x128xf32, #tpu.memory_space<vmem>> -> memref<1x128xf32, #tpu.memory_space<vmem>>
    %21 = tpu.memref_slice %arg6[%c0_i32_9] : memref<2x!tpu.dma_semaphore, #tpu.memory_space<semaphore_mem>> -> memref<1x!tpu.dma_semaphore, #tpu.memory_space<semaphore_mem>>
    %22 = tpu.memref_squeeze %21 : memref<1x!tpu.dma_semaphore, #tpu.memory_space<semaphore_mem>> -> memref<!tpu.dma_semaphore, #tpu.memory_space<semaphore_mem>>
    tpu.enqueue_dma source(%19 : memref<1x128xf32, #tpu.memory_space<any>>) target(%20 : memref<1x128xf32, #tpu.memory_space<vmem>>) target_semaphore(%22 : memref<!tpu.dma_semaphore, #tpu.memory_space<semaphore_mem>>)
    %c3_i32 = arith.constant 3 : i32
    %23 = arith.addi %1, %c3_i32 : i32
    %24 = arith.index_cast %23 : i32 to index
    %25 = memref.load %arg1[%24] : memref<16xi32, #tpu.memory_space<smem>>
    %c0_i32_13 = arith.constant 0 : i32
    %c0_i32_14 = arith.constant 0 : i32
    %26 = tpu.memref_slice %arg2[%25, %c0_i32_14] : memref<64x128xf32, #tpu.memory_space<any>> -> memref<1x128xf32, #tpu.memory_space<any>>
    %c3_i32_15 = arith.constant 3 : i32
    %c0_i32_16 = arith.constant 0 : i32
    %27 = tpu.memref_slice %arg5[%c3_i32_15, %c0_i32_16] : memref<16x128xf32, #tpu.memory_space<vmem>> -> memref<1x128xf32, #tpu.memory_space<vmem>>
    %28 = tpu.memref_slice %arg6[%c0_i32_13] : memref<2x!tpu.dma_semaphore, #tpu.memory_space<semaphore_mem>> -> memref<1x!tpu.dma_semaphore, #tpu.memory_space<semaphore_mem>>
    %29 = tpu.memref_squeeze %28 : memref<1x!tpu.dma_semaphore, #tpu.memory_space<semaphore_mem>> -> memref<!tpu.dma_semaphore, #tpu.memory_space<semaphore_mem>>
    tpu.enqueue_dma source(%26 : memref<1x128xf32, #tpu.memory_space<any>>) target(%27 : memref<1x128xf32, #tpu.memory_space<vmem>>) target_semaphore(%29 : memref<!tpu.dma_semaphore, #tpu.memory_space<semaphore_mem>>)
    %c4_i32 = arith.constant 4 : i32
    %30 = arith.addi %1, %c4_i32 : i32
    %31 = arith.index_cast %30 : i32 to index
    %32 = memref.load %arg1[%31] : memref<16xi32, #tpu.memory_space<smem>>
    %c0_i32_17 = arith.constant 0 : i32
    %c0_i32_18 = arith.constant 0 : i32
    %33 = tpu.memref_slice %arg2[%32, %c0_i32_18] : memref<64x128xf32, #tpu.memory_space<any>> -> memref<1x128xf32, #tpu.memory_space<any>>
    %c4_i32_19 = arith.constant 4 : i32
    %c0_i32_20 = arith.constant 0 : i32
    %34 = tpu.memref_slice %arg5[%c4_i32_19, %c0_i32_20] : memref<16x128xf32, #tpu.memory_space<vmem>> -> memref<1x128xf32, #tpu.memory_space<vmem>>
    %35 = tpu.memref_slice %arg6[%c0_i32_17] : memref<2x!tpu.dma_semaphore, #tpu.memory_space<semaphore_mem>> -> memref<1x!tpu.dma_semaphore, #tpu.memory_space<semaphore_mem>>
    %36 = tpu.memref_squeeze %35 : memref<1x!tpu.dma_semaphore, #tpu.memory_space<semaphore_mem>> -> memref<!tpu.dma_semaphore, #tpu.memory_space<semaphore_mem>>
    tpu.enqueue_dma source(%33 : memref<1x128xf32, #tpu.memory_space<any>>) target(%34 : memref<1x128xf32, #tpu.memory_space<vmem>>) target_semaphore(%36 : memref<!tpu.dma_semaphore, #tpu.memory_space<semaphore_mem>>)
    %c5_i32 = arith.constant 5 : i32
    %37 = arith.addi %1, %c5_i32 : i32
    %38 = arith.index_cast %37 : i32 to index
    %39 = memref.load %arg1[%38] : memref<16xi32, #tpu.memory_space<smem>>
    %c0_i32_21 = arith.constant 0 : i32
    %c0_i32_22 = arith.constant 0 : i32
    %40 = tpu.memref_slice %arg2[%39, %c0_i32_22] : memref<64x128xf32, #tpu.memory_space<any>> -> memref<1x128xf32, #tpu.memory_space<any>>
    %c5_i32_23 = arith.constant 5 : i32
    %c0_i32_24 = arith.constant 0 : i32
    %41 = tpu.memref_slice %arg5[%c5_i32_23, %c0_i32_24] : memref<16x128xf32, #tpu.memory_space<vmem>> -> memref<1x128xf32, #tpu.memory_space<vmem>>
    %42 = tpu.memref_slice %arg6[%c0_i32_21] : memref<2x!tpu.dma_semaphore, #tpu.memory_space<semaphore_mem>> -> memref<1x!tpu.dma_semaphore, #tpu.memory_space<semaphore_mem>>
    %43 = tpu.memref_squeeze %42 : memref<1x!tpu.dma_semaphore, #tpu.memory_space<semaphore_mem>> -> memref<!tpu.dma_semaphore, #tpu.memory_space<semaphore_mem>>
    tpu.enqueue_dma source(%40 : memref<1x128xf32, #tpu.memory_space<any>>) target(%41 : memref<1x128xf32, #tpu.memory_space<vmem>>) target_semaphore(%43 : memref<!tpu.dma_semaphore, #tpu.memory_space<semaphore_mem>>)
    %c6_i32 = arith.constant 6 : i32
    %44 = arith.addi %1, %c6_i32 : i32
    %45 = arith.index_cast %44 : i32 to index
    %46 = memref.load %arg1[%45] : memref<16xi32, #tpu.memory_space<smem>>
    %c0_i32_25 = arith.constant 0 : i32
    %c0_i32_26 = arith.constant 0 : i32
    %47 = tpu.memref_slice %arg2[%46, %c0_i32_26] : memref<64x128xf32, #tpu.memory_space<any>> -> memref<1x128xf32, #tpu.memory_space<any>>
    %c6_i32_27 = arith.constant 6 : i32
    %c0_i32_28 = arith.constant 0 : i32
    %48 = tpu.memref_slice %arg5[%c6_i32_27, %c0_i32_28] : memref<16x128xf32, #tpu.memory_space<vmem>> -> memref<1x128xf32, #tpu.memory_space<vmem>>
    %49 = tpu.memref_slice %arg6[%c0_i32_25] : memref<2x!tpu.dma_semaphore, #tpu.memory_space<semaphore_mem>> -> memref<1x!tpu.dma_semaphore, #tpu.memory_space<semaphore_mem>>
    %50 = tpu.memref_squeeze %49 : memref<1x!tpu.dma_semaphore, #tpu.memory_space<semaphore_mem>> -> memref<!tpu.dma_semaphore, #tpu.memory_space<semaphore_mem>>
    tpu.enqueue_dma source(%47 : memref<1x128xf32, #tpu.memory_space<any>>) target(%48 : memref<1x128xf32, #tpu.memory_space<vmem>>) target_semaphore(%50 : memref<!tpu.dma_semaphore, #tpu.memory_space<semaphore_mem>>)
    %c7_i32 = arith.constant 7 : i32
    %51 = arith.addi %1, %c7_i32 : i32
    %52 = arith.index_cast %51 : i32 to index
    %53 = memref.load %arg1[%52] : memref<16xi32, #tpu.memory_space<smem>>
    %c0_i32_29 = arith.constant 0 : i32
    %c0_i32_30 = arith.constant 0 : i32
    %54 = tpu.memref_slice %arg2[%53, %c0_i32_30] : memref<64x128xf32, #tpu.memory_space<any>> -> memref<1x128xf32, #tpu.memory_space<any>>
    %c7_i32_31 = arith.constant 7 : i32
    %c0_i32_32 = arith.constant 0 : i32
    %55 = tpu.memref_slice %arg5[%c7_i32_31, %c0_i32_32] : memref<16x128xf32, #tpu.memory_space<vmem>> -> memref<1x128xf32, #tpu.memory_space<vmem>>
    %56 = tpu.memref_slice %arg6[%c0_i32_29] : memref<2x!tpu.dma_semaphore, #tpu.memory_space<semaphore_mem>> -> memref<1x!tpu.dma_semaphore, #tpu.memory_space<semaphore_mem>>
    %57 = tpu.memref_squeeze %56 : memref<1x!tpu.dma_semaphore, #tpu.memory_space<semaphore_mem>> -> memref<!tpu.dma_semaphore, #tpu.memory_space<semaphore_mem>>
    tpu.enqueue_dma source(%54 : memref<1x128xf32, #tpu.memory_space<any>>) target(%55 : memref<1x128xf32, #tpu.memory_space<vmem>>) target_semaphore(%57 : memref<!tpu.dma_semaphore, #tpu.memory_space<semaphore_mem>>)
    %c8_i32 = arith.constant 8 : i32
    %58 = arith.addi %1, %c8_i32 : i32
    %59 = arith.index_cast %58 : i32 to index
    %60 = memref.load %arg1[%59] : memref<16xi32, #tpu.memory_space<smem>>
    %c0_i32_33 = arith.constant 0 : i32
    %c0_i32_34 = arith.constant 0 : i32
    %61 = tpu.memref_slice %arg2[%60, %c0_i32_34] : memref<64x128xf32, #tpu.memory_space<any>> -> memref<1x128xf32, #tpu.memory_space<any>>
    %c8_i32_35 = arith.constant 8 : i32
    %c0_i32_36 = arith.constant 0 : i32
    %62 = tpu.memref_slice %arg5[%c8_i32_35, %c0_i32_36] : memref<16x128xf32, #tpu.memory_space<vmem>> -> memref<1x128xf32, #tpu.memory_space<vmem>>
    %63 = tpu.memref_slice %arg6[%c0_i32_33] : memref<2x!tpu.dma_semaphore, #tpu.memory_space<semaphore_mem>> -> memref<1x!tpu.dma_semaphore, #tpu.memory_space<semaphore_mem>>
    %64 = tpu.memref_squeeze %63 : memref<1x!tpu.dma_semaphore, #tpu.memory_space<semaphore_mem>> -> memref<!tpu.dma_semaphore, #tpu.memory_space<semaphore_mem>>
    tpu.enqueue_dma source(%61 : memref<1x128xf32, #tpu.memory_space<any>>) target(%62 : memref<1x128xf32, #tpu.memory_space<vmem>>) target_semaphore(%64 : memref<!tpu.dma_semaphore, #tpu.memory_space<semaphore_mem>>)
    %c9_i32 = arith.constant 9 : i32
    %65 = arith.addi %1, %c9_i32 : i32
    %66 = arith.index_cast %65 : i32 to index
    %67 = memref.load %arg1[%66] : memref<16xi32, #tpu.memory_space<smem>>
    %c0_i32_37 = arith.constant 0 : i32
    %c0_i32_38 = arith.constant 0 : i32
    %68 = tpu.memref_slice %arg2[%67, %c0_i32_38] : memref<64x128xf32, #tpu.memory_space<any>> -> memref<1x128xf32, #tpu.memory_space<any>>
    %c9_i32_39 = arith.constant 9 : i32
    %c0_i32_40 = arith.constant 0 : i32
    %69 = tpu.memref_slice %arg5[%c9_i32_39, %c0_i32_40] : memref<16x128xf32, #tpu.memory_space<vmem>> -> memref<1x128xf32, #tpu.memory_space<vmem>>
    %70 = tpu.memref_slice %arg6[%c0_i32_37] : memref<2x!tpu.dma_semaphore, #tpu.memory_space<semaphore_mem>> -> memref<1x!tpu.dma_semaphore, #tpu.memory_space<semaphore_mem>>
    %71 = tpu.memref_squeeze %70 : memref<1x!tpu.dma_semaphore, #tpu.memory_space<semaphore_mem>> -> memref<!tpu.dma_semaphore, #tpu.memory_space<semaphore_mem>>
    tpu.enqueue_dma source(%68 : memref<1x128xf32, #tpu.memory_space<any>>) target(%69 : memref<1x128xf32, #tpu.memory_space<vmem>>) target_semaphore(%71 : memref<!tpu.dma_semaphore, #tpu.memory_space<semaphore_mem>>)
    %c10_i32 = arith.constant 10 : i32
    %72 = arith.addi %1, %c10_i32 : i32
    %73 = arith.index_cast %72 : i32 to index
    %74 = memref.load %arg1[%73] : memref<16xi32, #tpu.memory_space<smem>>
    %c0_i32_41 = arith.constant 0 : i32
    %c0_i32_42 = arith.constant 0 : i32
    %75 = tpu.memref_slice %arg2[%74, %c0_i32_42] : memref<64x128xf32, #tpu.memory_space<any>> -> memref<1x128xf32, #tpu.memory_space<any>>
    %c10_i32_43 = arith.constant 10 : i32
    %c0_i32_44 = arith.constant 0 : i32
    %76 = tpu.memref_slice %arg5[%c10_i32_43, %c0_i32_44] : memref<16x128xf32, #tpu.memory_space<vmem>> -> memref<1x128xf32, #tpu.memory_space<vmem>>
    %77 = tpu.memref_slice %arg6[%c0_i32_41] : memref<2x!tpu.dma_semaphore, #tpu.memory_space<semaphore_mem>> -> memref<1x!tpu.dma_semaphore, #tpu.memory_space<semaphore_mem>>
    %78 = tpu.memref_squeeze %77 : memref<1x!tpu.dma_semaphore, #tpu.memory_space<semaphore_mem>> -> memref<!tpu.dma_semaphore, #tpu.memory_space<semaphore_mem>>
    tpu.enqueue_dma source(%75 : memref<1x128xf32, #tpu.memory_space<any>>) target(%76 : memref<1x128xf32, #tpu.memory_space<vmem>>) target_semaphore(%78 : memref<!tpu.dma_semaphore, #tpu.memory_space<semaphore_mem>>)
    %c11_i32 = arith.constant 11 : i32
    %79 = arith.addi %1, %c11_i32 : i32
    %80 = arith.index_cast %79 : i32 to index
    %81 = memref.load %arg1[%80] : memref<16xi32, #tpu.memory_space<smem>>
    %c0_i32_45 = arith.constant 0 : i32
    %c0_i32_46 = arith.constant 0 : i32
    %82 = tpu.memref_slice %arg2[%81, %c0_i32_46] : memref<64x128xf32, #tpu.memory_space<any>> -> memref<1x128xf32, #tpu.memory_space<any>>
    %c11_i32_47 = arith.constant 11 : i32
    %c0_i32_48 = arith.constant 0 : i32
    %83 = tpu.memref_slice %arg5[%c11_i32_47, %c0_i32_48] : memref<16x128xf32, #tpu.memory_space<vmem>> -> memref<1x128xf32, #tpu.memory_space<vmem>>
    %84 = tpu.memref_slice %arg6[%c0_i32_45] : memref<2x!tpu.dma_semaphore, #tpu.memory_space<semaphore_mem>> -> memref<1x!tpu.dma_semaphore, #tpu.memory_space<semaphore_mem>>
    %85 = tpu.memref_squeeze %84 : memref<1x!tpu.dma_semaphore, #tpu.memory_space<semaphore_mem>> -> memref<!tpu.dma_semaphore, #tpu.memory_space<semaphore_mem>>
    tpu.enqueue_dma source(%82 : memref<1x128xf32, #tpu.memory_space<any>>) target(%83 : memref<1x128xf32, #tpu.memory_space<vmem>>) target_semaphore(%85 : memref<!tpu.dma_semaphore, #tpu.memory_space<semaphore_mem>>)
    %c12_i32 = arith.constant 12 : i32
    %86 = arith.addi %1, %c12_i32 : i32
    %87 = arith.index_cast %86 : i32 to index
    %88 = memref.load %arg1[%87] : memref<16xi32, #tpu.memory_space<smem>>
    %c0_i32_49 = arith.constant 0 : i32
    %c0_i32_50 = arith.constant 0 : i32
    %89 = tpu.memref_slice %arg2[%88, %c0_i32_50] : memref<64x128xf32, #tpu.memory_space<any>> -> memref<1x128xf32, #tpu.memory_space<any>>
    %c12_i32_51 = arith.constant 12 : i32
    %c0_i32_52 = arith.constant 0 : i32
    %90 = tpu.memref_slice %arg5[%c12_i32_51, %c0_i32_52] : memref<16x128xf32, #tpu.memory_space<vmem>> -> memref<1x128xf32, #tpu.memory_space<vmem>>
    %91 = tpu.memref_slice %arg6[%c0_i32_49] : memref<2x!tpu.dma_semaphore, #tpu.memory_space<semaphore_mem>> -> memref<1x!tpu.dma_semaphore, #tpu.memory_space<semaphore_mem>>
    %92 = tpu.memref_squeeze %91 : memref<1x!tpu.dma_semaphore, #tpu.memory_space<semaphore_mem>> -> memref<!tpu.dma_semaphore, #tpu.memory_space<semaphore_mem>>
    tpu.enqueue_dma source(%89 : memref<1x128xf32, #tpu.memory_space<any>>) target(%90 : memref<1x128xf32, #tpu.memory_space<vmem>>) target_semaphore(%92 : memref<!tpu.dma_semaphore, #tpu.memory_space<semaphore_mem>>)
    %c13_i32 = arith.constant 13 : i32
    %93 = arith.addi %1, %c13_i32 : i32
    %94 = arith.index_cast %93 : i32 to index
    %95 = memref.load %arg1[%94] : memref<16xi32, #tpu.memory_space<smem>>
    %c0_i32_53 = arith.constant 0 : i32
    %c0_i32_54 = arith.constant 0 : i32
    %96 = tpu.memref_slice %arg2[%95, %c0_i32_54] : memref<64x128xf32, #tpu.memory_space<any>> -> memref<1x128xf32, #tpu.memory_space<any>>
    %c13_i32_55 = arith.constant 13 : i32
    %c0_i32_56 = arith.constant 0 : i32
    %97 = tpu.memref_slice %arg5[%c13_i32_55, %c0_i32_56] : memref<16x128xf32, #tpu.memory_space<vmem>> -> memref<1x128xf32, #tpu.memory_space<vmem>>
    %98 = tpu.memref_slice %arg6[%c0_i32_53] : memref<2x!tpu.dma_semaphore, #tpu.memory_space<semaphore_mem>> -> memref<1x!tpu.dma_semaphore, #tpu.memory_space<semaphore_mem>>
    %99 = tpu.memref_squeeze %98 : memref<1x!tpu.dma_semaphore, #tpu.memory_space<semaphore_mem>> -> memref<!tpu.dma_semaphore, #tpu.memory_space<semaphore_mem>>
    tpu.enqueue_dma source(%96 : memref<1x128xf32, #tpu.memory_space<any>>) target(%97 : memref<1x128xf32, #tpu.memory_space<vmem>>) target_semaphore(%99 : memref<!tpu.dma_semaphore, #tpu.memory_space<semaphore_mem>>)
    %c14_i32 = arith.constant 14 : i32
    %100 = arith.addi %1, %c14_i32 : i32
    %101 = arith.index_cast %100 : i32 to index
    %102 = memref.load %arg1[%101] : memref<16xi32, #tpu.memory_space<smem>>
    %c0_i32_57 = arith.constant 0 : i32
    %c0_i32_58 = arith.constant 0 : i32
    %103 = tpu.memref_slice %arg2[%102, %c0_i32_58] : memref<64x128xf32, #tpu.memory_space<any>> -> memref<1x128xf32, #tpu.memory_space<any>>
    %c14_i32_59 = arith.constant 14 : i32
    %c0_i32_60 = arith.constant 0 : i32
    %104 = tpu.memref_slice %arg5[%c14_i32_59, %c0_i32_60] : memref<16x128xf32, #tpu.memory_space<vmem>> -> memref<1x128xf32, #tpu.memory_space<vmem>>
    %105 = tpu.memref_slice %arg6[%c0_i32_57] : memref<2x!tpu.dma_semaphore, #tpu.memory_space<semaphore_mem>> -> memref<1x!tpu.dma_semaphore, #tpu.memory_space<semaphore_mem>>
    %106 = tpu.memref_squeeze %105 : memref<1x!tpu.dma_semaphore, #tpu.memory_space<semaphore_mem>> -> memref<!tpu.dma_semaphore, #tpu.memory_space<semaphore_mem>>
    tpu.enqueue_dma source(%103 : memref<1x128xf32, #tpu.memory_space<any>>) target(%104 : memref<1x128xf32, #tpu.memory_space<vmem>>) target_semaphore(%106 : memref<!tpu.dma_semaphore, #tpu.memory_space<semaphore_mem>>)
    %c15_i32 = arith.constant 15 : i32
    %107 = arith.addi %1, %c15_i32 : i32
    %108 = arith.index_cast %107 : i32 to index
    %109 = memref.load %arg1[%108] : memref<16xi32, #tpu.memory_space<smem>>
    %c0_i32_61 = arith.constant 0 : i32
    %c0_i32_62 = arith.constant 0 : i32
    %110 = tpu.memref_slice %arg2[%109, %c0_i32_62] : memref<64x128xf32, #tpu.memory_space<any>> -> memref<1x128xf32, #tpu.memory_space<any>>
    %c15_i32_63 = arith.constant 15 : i32
    %c0_i32_64 = arith.constant 0 : i32
    %111 = tpu.memref_slice %arg5[%c15_i32_63, %c0_i32_64] : memref<16x128xf32, #tpu.memory_space<vmem>> -> memref<1x128xf32, #tpu.memory_space<vmem>>
    %112 = tpu.memref_slice %arg6[%c0_i32_61] : memref<2x!tpu.dma_semaphore, #tpu.memory_space<semaphore_mem>> -> memref<1x!tpu.dma_semaphore, #tpu.memory_space<semaphore_mem>>
    %113 = tpu.memref_squeeze %112 : memref<1x!tpu.dma_semaphore, #tpu.memory_space<semaphore_mem>> -> memref<!tpu.dma_semaphore, #tpu.memory_space<semaphore_mem>>
    tpu.enqueue_dma source(%110 : memref<1x128xf32, #tpu.memory_space<any>>) target(%111 : memref<1x128xf32, #tpu.memory_space<vmem>>) target_semaphore(%113 : memref<!tpu.dma_semaphore, #tpu.memory_space<semaphore_mem>>)
    %c0_i32_65 = arith.constant 0 : i32
    %c0_i32_66 = arith.constant 0 : i32
    %c0_i32_67 = arith.constant 0 : i32
    %114 = tpu.memref_slice %arg2[%c0_i32_66, %c0_i32_67] : memref<64x128xf32, #tpu.memory_space<any>> -> memref<1x128xf32, #tpu.memory_space<any>>
    %c0_i32_68 = arith.constant 0 : i32
    %c0_i32_69 = arith.constant 0 : i32
    %115 = tpu.memref_slice %arg5[%c0_i32_68, %c0_i32_69] : memref<16x128xf32, #tpu.memory_space<vmem>> -> memref<1x128xf32, #tpu.memory_space<vmem>>
    %116 = tpu.memref_slice %arg6[%c0_i32_65] : memref<2x!tpu.dma_semaphore, #tpu.memory_space<semaphore_mem>> -> memref<1x!tpu.dma_semaphore, #tpu.memory_space<semaphore_mem>>
    %117 = tpu.memref_squeeze %116 : memref<1x!tpu.dma_semaphore, #tpu.memory_space<semaphore_mem>> -> memref<!tpu.dma_semaphore, #tpu.memory_space<semaphore_mem>>
    tpu.wait_dma2 semaphore(%117 : memref<!tpu.dma_semaphore, #tpu.memory_space<semaphore_mem>>) src(%114 : memref<1x128xf32, #tpu.memory_space<any>>) dst(%115 : memref<1x128xf32, #tpu.memory_space<vmem>>)
    %c0_i32_70 = arith.constant 0 : i32
    %c0_i32_71 = arith.constant 0 : i32
    %c0_i32_72 = arith.constant 0 : i32
    %118 = tpu.memref_slice %arg2[%c0_i32_71, %c0_i32_72] : memref<64x128xf32, #tpu.memory_space<any>> -> memref<1x128xf32, #tpu.memory_space<any>>
    %c0_i32_73 = arith.constant 0 : i32
    %c0_i32_74 = arith.constant 0 : i32
    %119 = tpu.memref_slice %arg5[%c0_i32_73, %c0_i32_74] : memref<16x128xf32, #tpu.memory_space<vmem>> -> memref<1x128xf32, #tpu.memory_space<vmem>>
    %120 = tpu.memref_slice %arg6[%c0_i32_70] : memref<2x!tpu.dma_semaphore, #tpu.memory_space<semaphore_mem>> -> memref<1x!tpu.dma_semaphore, #tpu.memory_space<semaphore_mem>>
    %121 = tpu.memref_squeeze %120 : memref<1x!tpu.dma_semaphore, #tpu.memory_space<semaphore_mem>> -> memref<!tpu.dma_semaphore, #tpu.memory_space<semaphore_mem>>
    tpu.wait_dma2 semaphore(%121 : memref<!tpu.dma_semaphore, #tpu.memory_space<semaphore_mem>>) src(%118 : memref<1x128xf32, #tpu.memory_space<any>>) dst(%119 : memref<1x128xf32, #tpu.memory_space<vmem>>)
    %c0_i32_75 = arith.constant 0 : i32
    %c0_i32_76 = arith.constant 0 : i32
    %c0_i32_77 = arith.constant 0 : i32
    %122 = tpu.memref_slice %arg2[%c0_i32_76, %c0_i32_77] : memref<64x128xf32, #tpu.memory_space<any>> -> memref<1x128xf32, #tpu.memory_space<any>>
    %c0_i32_78 = arith.constant 0 : i32
    %c0_i32_79 = arith.constant 0 : i32
    %123 = tpu.memref_slice %arg5[%c0_i32_78, %c0_i32_79] : memref<16x128xf32, #tpu.memory_space<vmem>> -> memref<1x128xf32, #tpu.memory_space<vmem>>
    %124 = tpu.memref_slice %arg6[%c0_i32_75] : memref<2x!tpu.dma_semaphore, #tpu.memory_space<semaphore_mem>> -> memref<1x!tpu.dma_semaphore, #tpu.memory_space<semaphore_mem>>
    %125 = tpu.memref_squeeze %124 : memref<1x!tpu.dma_semaphore, #tpu.memory_space<semaphore_mem>> -> memref<!tpu.dma_semaphore, #tpu.memory_space<semaphore_mem>>
    tpu.wait_dma2 semaphore(%125 : memref<!tpu.dma_semaphore, #tpu.memory_space<semaphore_mem>>) src(%122 : memref<1x128xf32, #tpu.memory_space<any>>) dst(%123 : memref<1x128xf32, #tpu.memory_space<vmem>>)
    %c0_i32_80 = arith.constant 0 : i32
    %c0_i32_81 = arith.constant 0 : i32
    %c0_i32_82 = arith.constant 0 : i32
    %126 = tpu.memref_slice %arg2[%c0_i32_81, %c0_i32_82] : memref<64x128xf32, #tpu.memory_space<any>> -> memref<1x128xf32, #tpu.memory_space<any>>
    %c0_i32_83 = arith.constant 0 : i32
    %c0_i32_84 = arith.constant 0 : i32
    %127 = tpu.memref_slice %arg5[%c0_i32_83, %c0_i32_84] : memref<16x128xf32, #tpu.memory_space<vmem>> -> memref<1x128xf32, #tpu.memory_space<vmem>>
    %128 = tpu.memref_slice %arg6[%c0_i32_80] : memref<2x!tpu.dma_semaphore, #tpu.memory_space<semaphore_mem>> -> memref<1x!tpu.dma_semaphore, #tpu.memory_space<semaphore_mem>>
    %129 = tpu.memref_squeeze %128 : memref<1x!tpu.dma_semaphore, #tpu.memory_space<semaphore_mem>> -> memref<!tpu.dma_semaphore, #tpu.memory_space<semaphore_mem>>
    tpu.wait_dma2 semaphore(%129 : memref<!tpu.dma_semaphore, #tpu.memory_space<semaphore_mem>>) src(%126 : memref<1x128xf32, #tpu.memory_space<any>>) dst(%127 : memref<1x128xf32, #tpu.memory_space<vmem>>)
    %c0_i32_85 = arith.constant 0 : i32
    %c0_i32_86 = arith.constant 0 : i32
    %c0_i32_87 = arith.constant 0 : i32
    %130 = tpu.memref_slice %arg2[%c0_i32_86, %c0_i32_87] : memref<64x128xf32, #tpu.memory_space<any>> -> memref<1x128xf32, #tpu.memory_space<any>>
    %c0_i32_88 = arith.constant 0 : i32
    %c0_i32_89 = arith.constant 0 : i32
    %131 = tpu.memref_slice %arg5[%c0_i32_88, %c0_i32_89] : memref<16x128xf32, #tpu.memory_space<vmem>> -> memref<1x128xf32, #tpu.memory_space<vmem>>
    %132 = tpu.memref_slice %arg6[%c0_i32_85] : memref<2x!tpu.dma_semaphore, #tpu.memory_space<semaphore_mem>> -> memref<1x!tpu.dma_semaphore, #tpu.memory_space<semaphore_mem>>
    %133 = tpu.memref_squeeze %132 : memref<1x!tpu.dma_semaphore, #tpu.memory_space<semaphore_mem>> -> memref<!tpu.dma_semaphore, #tpu.memory_space<semaphore_mem>>
    tpu.wait_dma2 semaphore(%133 : memref<!tpu.dma_semaphore, #tpu.memory_space<semaphore_mem>>) src(%130 : memref<1x128xf32, #tpu.memory_space<any>>) dst(%131 : memref<1x128xf32, #tpu.memory_space<vmem>>)
    %c0_i32_90 = arith.constant 0 : i32
    %c0_i32_91 = arith.constant 0 : i32
    %c0_i32_92 = arith.constant 0 : i32
    %134 = tpu.memref_slice %arg2[%c0_i32_91, %c0_i32_92] : memref<64x128xf32, #tpu.memory_space<any>> -> memref<1x128xf32, #tpu.memory_space<any>>
    %c0_i32_93 = arith.constant 0 : i32
    %c0_i32_94 = arith.constant 0 : i32
    %135 = tpu.memref_slice %arg5[%c0_i32_93, %c0_i32_94] : memref<16x128xf32, #tpu.memory_space<vmem>> -> memref<1x128xf32, #tpu.memory_space<vmem>>
    %136 = tpu.memref_slice %arg6[%c0_i32_90] : memref<2x!tpu.dma_semaphore, #tpu.memory_space<semaphore_mem>> -> memref<1x!tpu.dma_semaphore, #tpu.memory_space<semaphore_mem>>
    %137 = tpu.memref_squeeze %136 : memref<1x!tpu.dma_semaphore, #tpu.memory_space<semaphore_mem>> -> memref<!tpu.dma_semaphore, #tpu.memory_space<semaphore_mem>>
    tpu.wait_dma2 semaphore(%137 : memref<!tpu.dma_semaphore, #tpu.memory_space<semaphore_mem>>) src(%134 : memref<1x128xf32, #tpu.memory_space<any>>) dst(%135 : memref<1x128xf32, #tpu.memory_space<vmem>>)
    %c0_i32_95 = arith.constant 0 : i32
    %c0_i32_96 = arith.constant 0 : i32
    %c0_i32_97 = arith.constant 0 : i32
    %138 = tpu.memref_slice %arg2[%c0_i32_96, %c0_i32_97] : memref<64x128xf32, #tpu.memory_space<any>> -> memref<1x128xf32, #tpu.memory_space<any>>
    %c0_i32_98 = arith.constant 0 : i32
    %c0_i32_99 = arith.constant 0 : i32
    %139 = tpu.memref_slice %arg5[%c0_i32_98, %c0_i32_99] : memref<16x128xf32, #tpu.memory_space<vmem>> -> memref<1x128xf32, #tpu.memory_space<vmem>>
    %140 = tpu.memref_slice %arg6[%c0_i32_95] : memref<2x!tpu.dma_semaphore, #tpu.memory_space<semaphore_mem>> -> memref<1x!tpu.dma_semaphore, #tpu.memory_space<semaphore_mem>>
    %141 = tpu.memref_squeeze %140 : memref<1x!tpu.dma_semaphore, #tpu.memory_space<semaphore_mem>> -> memref<!tpu.dma_semaphore, #tpu.memory_space<semaphore_mem>>
    tpu.wait_dma2 semaphore(%141 : memref<!tpu.dma_semaphore, #tpu.memory_space<semaphore_mem>>) src(%138 : memref<1x128xf32, #tpu.memory_space<any>>) dst(%139 : memref<1x128xf32, #tpu.memory_space<vmem>>)
    %c0_i32_100 = arith.constant 0 : i32
    %c0_i32_101 = arith.constant 0 : i32
    %c0_i32_102 = arith.constant 0 : i32
    %142 = tpu.memref_slice %arg2[%c0_i32_101, %c0_i32_102] : memref<64x128xf32, #tpu.memory_space<any>> -> memref<1x128xf32, #tpu.memory_space<any>>
    %c0_i32_103 = arith.constant 0 : i32
    %c0_i32_104 = arith.constant 0 : i32
    %143 = tpu.memref_slice %arg5[%c0_i32_103, %c0_i32_104] : memref<16x128xf32, #tpu.memory_space<vmem>> -> memref<1x128xf32, #tpu.memory_space<vmem>>
    %144 = tpu.memref_slice %arg6[%c0_i32_100] : memref<2x!tpu.dma_semaphore, #tpu.memory_space<semaphore_mem>> -> memref<1x!tpu.dma_semaphore, #tpu.memory_space<semaphore_mem>>
    %145 = tpu.memref_squeeze %144 : memref<1x!tpu.dma_semaphore, #tpu.memory_space<semaphore_mem>> -> memref<!tpu.dma_semaphore, #tpu.memory_space<semaphore_mem>>
    tpu.wait_dma2 semaphore(%145 : memref<!tpu.dma_semaphore, #tpu.memory_space<semaphore_mem>>) src(%142 : memref<1x128xf32, #tpu.memory_space<any>>) dst(%143 : memref<1x128xf32, #tpu.memory_space<vmem>>)
    %c0_i32_105 = arith.constant 0 : i32
    %c0_i32_106 = arith.constant 0 : i32
    %c0_i32_107 = arith.constant 0 : i32
    %146 = tpu.memref_slice %arg2[%c0_i32_106, %c0_i32_107] : memref<64x128xf32, #tpu.memory_space<any>> -> memref<1x128xf32, #tpu.memory_space<any>>
    %c0_i32_108 = arith.constant 0 : i32
    %c0_i32_109 = arith.constant 0 : i32
    %147 = tpu.memref_slice %arg5[%c0_i32_108, %c0_i32_109] : memref<16x128xf32, #tpu.memory_space<vmem>> -> memref<1x128xf32, #tpu.memory_space<vmem>>
    %148 = tpu.memref_slice %arg6[%c0_i32_105] : memref<2x!tpu.dma_semaphore, #tpu.memory_space<semaphore_mem>> -> memref<1x!tpu.dma_semaphore, #tpu.memory_space<semaphore_mem>>
    %149 = tpu.memref_squeeze %148 : memref<1x!tpu.dma_semaphore, #tpu.memory_space<semaphore_mem>> -> memref<!tpu.dma_semaphore, #tpu.memory_space<semaphore_mem>>
    tpu.wait_dma2 semaphore(%149 : memref<!tpu.dma_semaphore, #tpu.memory_space<semaphore_mem>>) src(%146 : memref<1x128xf32, #tpu.memory_space<any>>) dst(%147 : memref<1x128xf32, #tpu.memory_space<vmem>>)
    %c0_i32_110 = arith.constant 0 : i32
    %c0_i32_111 = arith.constant 0 : i32
    %c0_i32_112 = arith.constant 0 : i32
    %150 = tpu.memref_slice %arg2[%c0_i32_111, %c0_i32_112] : memref<64x128xf32, #tpu.memory_space<any>> -> memref<1x128xf32, #tpu.memory_space<any>>
    %c0_i32_113 = arith.constant 0 : i32
    %c0_i32_114 = arith.constant 0 : i32
    %151 = tpu.memref_slice %arg5[%c0_i32_113, %c0_i32_114] : memref<16x128xf32, #tpu.memory_space<vmem>> -> memref<1x128xf32, #tpu.memory_space<vmem>>
    %152 = tpu.memref_slice %arg6[%c0_i32_110] : memref<2x!tpu.dma_semaphore, #tpu.memory_space<semaphore_mem>> -> memref<1x!tpu.dma_semaphore, #tpu.memory_space<semaphore_mem>>
    %153 = tpu.memref_squeeze %152 : memref<1x!tpu.dma_semaphore, #tpu.memory_space<semaphore_mem>> -> memref<!tpu.dma_semaphore, #tpu.memory_space<semaphore_mem>>
    tpu.wait_dma2 semaphore(%153 : memref<!tpu.dma_semaphore, #tpu.memory_space<semaphore_mem>>) src(%150 : memref<1x128xf32, #tpu.memory_space<any>>) dst(%151 : memref<1x128xf32, #tpu.memory_space<vmem>>)
    %c0_i32_115 = arith.constant 0 : i32
    %c0_i32_116 = arith.constant 0 : i32
    %c0_i32_117 = arith.constant 0 : i32
    %154 = tpu.memref_slice %arg2[%c0_i32_116, %c0_i32_117] : memref<64x128xf32, #tpu.memory_space<any>> -> memref<1x128xf32, #tpu.memory_space<any>>
    %c0_i32_118 = arith.constant 0 : i32
    %c0_i32_119 = arith.constant 0 : i32
    %155 = tpu.memref_slice %arg5[%c0_i32_118, %c0_i32_119] : memref<16x128xf32, #tpu.memory_space<vmem>> -> memref<1x128xf32, #tpu.memory_space<vmem>>
    %156 = tpu.memref_slice %arg6[%c0_i32_115] : memref<2x!tpu.dma_semaphore, #tpu.memory_space<semaphore_mem>> -> memref<1x!tpu.dma_semaphore, #tpu.memory_space<semaphore_mem>>
    %157 = tpu.memref_squeeze %156 : memref<1x!tpu.dma_semaphore, #tpu.memory_space<semaphore_mem>> -> memref<!tpu.dma_semaphore, #tpu.memory_space<semaphore_mem>>
    tpu.wait_dma2 semaphore(%157 : memref<!tpu.dma_semaphore, #tpu.memory_space<semaphore_mem>>) src(%154 : memref<1x128xf32, #tpu.memory_space<any>>) dst(%155 : memref<1x128xf32, #tpu.memory_space<vmem>>)
    %c0_i32_120 = arith.constant 0 : i32
    %c0_i32_121 = arith.constant 0 : i32
    %c0_i32_122 = arith.constant 0 : i32
    %158 = tpu.memref_slice %arg2[%c0_i32_121, %c0_i32_122] : memref<64x128xf32, #tpu.memory_space<any>> -> memref<1x128xf32, #tpu.memory_space<any>>
    %c0_i32_123 = arith.constant 0 : i32
    %c0_i32_124 = arith.constant 0 : i32
    %159 = tpu.memref_slice %arg5[%c0_i32_123, %c0_i32_124] : memref<16x128xf32, #tpu.memory_space<vmem>> -> memref<1x128xf32, #tpu.memory_space<vmem>>
    %160 = tpu.memref_slice %arg6[%c0_i32_120] : memref<2x!tpu.dma_semaphore, #tpu.memory_space<semaphore_mem>> -> memref<1x!tpu.dma_semaphore, #tpu.memory_space<semaphore_mem>>
    %161 = tpu.memref_squeeze %160 : memref<1x!tpu.dma_semaphore, #tpu.memory_space<semaphore_mem>> -> memref<!tpu.dma_semaphore, #tpu.memory_space<semaphore_mem>>
    tpu.wait_dma2 semaphore(%161 : memref<!tpu.dma_semaphore, #tpu.memory_space<semaphore_mem>>) src(%158 : memref<1x128xf32, #tpu.memory_space<any>>) dst(%159 : memref<1x128xf32, #tpu.memory_space<vmem>>)
    %c0_i32_125 = arith.constant 0 : i32
    %c0_i32_126 = arith.constant 0 : i32
    %c0_i32_127 = arith.constant 0 : i32
    %162 = tpu.memref_slice %arg2[%c0_i32_126, %c0_i32_127] : memref<64x128xf32, #tpu.memory_space<any>> -> memref<1x128xf32, #tpu.memory_space<any>>
    %c0_i32_128 = arith.constant 0 : i32
    %c0_i32_129 = arith.constant 0 : i32
    %163 = tpu.memref_slice %arg5[%c0_i32_128, %c0_i32_129] : memref<16x128xf32, #tpu.memory_space<vmem>> -> memref<1x128xf32, #tpu.memory_space<vmem>>
    %164 = tpu.memref_slice %arg6[%c0_i32_125] : memref<2x!tpu.dma_semaphore, #tpu.memory_space<semaphore_mem>> -> memref<1x!tpu.dma_semaphore, #tpu.memory_space<semaphore_mem>>
    %165 = tpu.memref_squeeze %164 : memref<1x!tpu.dma_semaphore, #tpu.memory_space<semaphore_mem>> -> memref<!tpu.dma_semaphore, #tpu.memory_space<semaphore_mem>>
    tpu.wait_dma2 semaphore(%165 : memref<!tpu.dma_semaphore, #tpu.memory_space<semaphore_mem>>) src(%162 : memref<1x128xf32, #tpu.memory_space<any>>) dst(%163 : memref<1x128xf32, #tpu.memory_space<vmem>>)
    %c0_i32_130 = arith.constant 0 : i32
    %c0_i32_131 = arith.constant 0 : i32
    %c0_i32_132 = arith.constant 0 : i32
    %166 = tpu.memref_slice %arg2[%c0_i32_131, %c0_i32_132] : memref<64x128xf32, #tpu.memory_space<any>> -> memref<1x128xf32, #tpu.memory_space<any>>
    %c0_i32_133 = arith.constant 0 : i32
    %c0_i32_134 = arith.constant 0 : i32
    %167 = tpu.memref_slice %arg5[%c0_i32_133, %c0_i32_134] : memref<16x128xf32, #tpu.memory_space<vmem>> -> memref<1x128xf32, #tpu.memory_space<vmem>>
    %168 = tpu.memref_slice %arg6[%c0_i32_130] : memref<2x!tpu.dma_semaphore, #tpu.memory_space<semaphore_mem>> -> memref<1x!tpu.dma_semaphore, #tpu.memory_space<semaphore_mem>>
    %169 = tpu.memref_squeeze %168 : memref<1x!tpu.dma_semaphore, #tpu.memory_space<semaphore_mem>> -> memref<!tpu.dma_semaphore, #tpu.memory_space<semaphore_mem>>
    tpu.wait_dma2 semaphore(%169 : memref<!tpu.dma_semaphore, #tpu.memory_space<semaphore_mem>>) src(%166 : memref<1x128xf32, #tpu.memory_space<any>>) dst(%167 : memref<1x128xf32, #tpu.memory_space<vmem>>)
    %c0_i32_135 = arith.constant 0 : i32
    %c0_i32_136 = arith.constant 0 : i32
    %c0_i32_137 = arith.constant 0 : i32
    %170 = tpu.memref_slice %arg2[%c0_i32_136, %c0_i32_137] : memref<64x128xf32, #tpu.memory_space<any>> -> memref<1x128xf32, #tpu.memory_space<any>>
    %c0_i32_138 = arith.constant 0 : i32
    %c0_i32_139 = arith.constant 0 : i32
    %171 = tpu.memref_slice %arg5[%c0_i32_138, %c0_i32_139] : memref<16x128xf32, #tpu.memory_space<vmem>> -> memref<1x128xf32, #tpu.memory_space<vmem>>
    %172 = tpu.memref_slice %arg6[%c0_i32_135] : memref<2x!tpu.dma_semaphore, #tpu.memory_space<semaphore_mem>> -> memref<1x!tpu.dma_semaphore, #tpu.memory_space<semaphore_mem>>
    %173 = tpu.memref_squeeze %172 : memref<1x!tpu.dma_semaphore, #tpu.memory_space<semaphore_mem>> -> memref<!tpu.dma_semaphore, #tpu.memory_space<semaphore_mem>>
    tpu.wait_dma2 semaphore(%173 : memref<!tpu.dma_semaphore, #tpu.memory_space<semaphore_mem>>) src(%170 : memref<1x128xf32, #tpu.memory_space<any>>) dst(%171 : memref<1x128xf32, #tpu.memory_space<vmem>>)
    %c0_i32_140 = arith.constant 0 : i32
    %c0_i32_141 = arith.constant 0 : i32
    %c0_i32_142 = arith.constant 0 : i32
    %174 = tpu.memref_slice %arg2[%c0_i32_141, %c0_i32_142] : memref<64x128xf32, #tpu.memory_space<any>> -> memref<1x128xf32, #tpu.memory_space<any>>
    %c0_i32_143 = arith.constant 0 : i32
    %c0_i32_144 = arith.constant 0 : i32
    %175 = tpu.memref_slice %arg5[%c0_i32_143, %c0_i32_144] : memref<16x128xf32, #tpu.memory_space<vmem>> -> memref<1x128xf32, #tpu.memory_space<vmem>>
    %176 = tpu.memref_slice %arg6[%c0_i32_140] : memref<2x!tpu.dma_semaphore, #tpu.memory_space<semaphore_mem>> -> memref<1x!tpu.dma_semaphore, #tpu.memory_space<semaphore_mem>>
    %177 = tpu.memref_squeeze %176 : memref<1x!tpu.dma_semaphore, #tpu.memory_space<semaphore_mem>> -> memref<!tpu.dma_semaphore, #tpu.memory_space<semaphore_mem>>
    tpu.wait_dma2 semaphore(%177 : memref<!tpu.dma_semaphore, #tpu.memory_space<semaphore_mem>>) src(%174 : memref<1x128xf32, #tpu.memory_space<any>>) dst(%175 : memref<1x128xf32, #tpu.memory_space<vmem>>)
    %c0 = arith.constant 0 : index
    %c0_145 = arith.constant 0 : index
    %178 = vector.load %arg5[%c0, %c0_145] : memref<16x128xf32, #tpu.memory_space<vmem>>, vector<16x128xf32>
    %c0_146 = arith.constant 0 : index
    %c0_147 = arith.constant 0 : index
    %179 = vector.load %arg3[%c0_146, %c0_147] : memref<128x128xf32, #tpu.memory_space<vmem>>, vector<128x128xf32>
    %cst = arith.constant dense<0.000000e+00> : vector<16x128xf32>
    %180 = tpu.matmul %178, %179, %cst {dimension_numbers = #tpu.dot_dimension_numbers<[1], [0], [0], [1], [0, 0, 1, 1], [], []>} : vector<16x128xf32>, vector<128x128xf32>, vector<16x128xf32> -> vector<16x128xf32>
    %c0_148 = arith.constant 0 : index
    %c0_149 = arith.constant 0 : index
    %181 = vector.load %arg4[%c0_148, %c0_149] : memref<16x128xf32, #tpu.memory_space<vmem>>, vector<16x128xf32>
    tpu.vector_store %arg4[%c0_148, %c0_149], %180 {strides = array<i32>} : memref<16x128xf32, #tpu.memory_space<vmem>>, vector<16x128xf32>,
    return
  }
  func.func @transform_1(%arg0: i32, %arg1: memref<16xi32, #tpu.memory_space<smem>>) -> (i32, i32) {
    %c0_i32 = arith.constant 0 : i32
    %c0_i32_0 = arith.constant 0 : i32
    %c0_i32_1 = arith.constant 0 : i32
    return %c0_i32, %c0_i32_0 : i32, i32
  }
  func.func @transform_2(%arg0: i32, %arg1: memref<16xi32, #tpu.memory_space<smem>>) -> (i32, i32) {
    %c0_i32 = arith.constant 0 : i32
    %c0_i32_0 = arith.constant 0 : i32
    return %arg0, %c0_i32 : i32, i32
  }
}

</mosaic_0001>

<llo_original>
// kernel: tpu_custom_call.1
$region0: #{tpu_custom_call.1}
  #allocation0 [shape = 'u32[]', space=smem, size = 0x4, offset = 0x4, fixed_abs, tag = 'smem constant byte address 0x4 - core index']
  #allocation1 [shape = 'u32[72,128]{1,0:T(1,128)}', space=vmem, size = 0x9000, scoped, tag = 'internal scratch']
  #allocation2 [shape = 'f32[16,128]{1,0:T(8,128)}', space=vmem, size = 0x2000, scoped, tag = 'scratch operand']
  #allocation3 [shape = 's32[2]{0}', space=sflag, size = 0x8, scoped, tag = 'scratch operand']
  #allocation4 [shape = 's32[1]{0}', space=sflag, size = 0x4, scoped, tag = 'scoped memory for tpu_custom_call.1']
  #allocation5 [shape = 'u8[512]{0}', space=smem, size = 0x200, scoped, tag = 'prefetched SMEM operand 0']
  #allocation10 [shape = 's32[]', space=sflag, size = 0x4, offset = 0, fixed_abs, tag = 'sflag constant byte address 0x0 - dummy sync flag']
  #allocation11 [shape = 's32[]', space=sflag, size = 0x4, offset = 0, fixed_abs, tag = 'sflag constant byte address 0x0 - dummy sync flag']
  #allocation12 [shape = 'u32[]', space=smem, size = 0x4, offset = 0x44, fixed_abs, tag = 'smem constant byte address 0x44 - assertion arg 0']
  #allocation13 [shape = 'u32[]', space=smem, size = 0x4, offset = 0x48, fixed_abs, tag = 'smem constant byte address 0x48 - assertion arg 1']
  #allocation14 [shape = 's32[]', space=sflag, size = 0x4, offset = 0, fixed_abs, tag = 'sflag constant byte address 0x0 - dummy sync flag']
  #allocation15 [shape = 's32[]', space=sflag, size = 0x4, offset = 0, fixed_abs, tag = 'sflag constant byte address 0x0 - dummy sync flag']
  #allocation16 [shape = 's32[]', space=sflag, size = 0x4, offset = 0, fixed_abs, tag = 'sflag constant byte address 0x0 - dummy sync flag']
  #allocation17 [shape = 's32[]', space=sflag, size = 0x4, offset = 0, fixed_abs, tag = 'sflag constant byte address 0x0 - dummy sync flag']
  #allocation18 [shape = 's32[]', space=sflag, size = 0x4, offset = 0, fixed_abs, tag = 'sflag constant byte address 0x0 - dummy sync flag']
  #allocation19 [shape = 's32[]', space=sflag, size = 0x4, offset = 0, fixed_abs, tag = 'sflag constant byte address 0x0 - dummy sync flag']
  #allocation20 [shape = 's32[]', space=sflag, size = 0x4, offset = 0, fixed_abs, tag = 'sflag constant byte address 0x0 - dummy sync flag']
  #allocation21 [shape = 's32[]', space=sflag, size = 0x4, offset = 0, fixed_abs, tag = 'sflag constant byte address 0x0 - dummy sync flag']
  #allocation22 [shape = 's32[]', space=sflag, size = 0x4, offset = 0, fixed_abs, tag = 'sflag constant byte address 0x0 - dummy sync flag']
  #allocation23 [shape = 's32[]', space=sflag, size = 0x4, offset = 0, fixed_abs, tag = 'sflag constant byte address 0x0 - dummy sync flag']
  #allocation24 [shape = 's32[]', space=sflag, size = 0x4, offset = 0, fixed_abs, tag = 'sflag constant byte address 0x0 - dummy sync flag']
  #allocation25 [shape = 's32[]', space=sflag, size = 0x4, offset = 0, fixed_abs, tag = 'sflag constant byte address 0x0 - dummy sync flag']
  #allocation26 [shape = 's32[]', space=sflag, size = 0x4, offset = 0, fixed_abs, tag = 'sflag constant byte address 0x0 - dummy sync flag']
  #allocation27 [shape = 's32[]', space=sflag, size = 0x4, offset = 0, fixed_abs, tag = 'sflag constant byte address 0x0 - dummy sync flag']
  #allocation28 [shape = 's32[]', space=sflag, size = 0x4, offset = 0, fixed_abs, tag = 'sflag constant byte address 0x0 - dummy sync flag']
  #allocation29 [shape = 's32[]', space=sflag, size = 0x4, offset = 0, fixed_abs, tag = 'sflag constant byte address 0x0 - dummy sync flag']
  #allocation30 [shape = 's32[]', space=sflag, size = 0x4, offset = 0, fixed_abs, tag = 'sflag constant byte address 0x0 - dummy sync flag']
  #allocation31 [shape = 's32[]', space=sflag, size = 0x4, offset = 0, fixed_abs, tag = 'sflag constant byte address 0x0 - dummy sync flag']
  #allocation32 [shape = 's32[]', space=sflag, size = 0x4, offset = 0, fixed_abs, tag = 'sflag constant byte address 0x0 - dummy sync flag']
  #allocation33 [shape = 's32[]', space=sflag, size = 0x4, offset = 0, fixed_abs, tag = 'sflag constant byte address 0x0 - dummy sync flag']
  #allocation34 [shape = 's32[]', space=sflag, size = 0x4, offset = 0, fixed_abs, tag = 'sflag constant byte address 0x0 - dummy sync flag']
  #allocation35 [shape = 's32[]', space=sflag, size = 0x4, offset = 0, fixed_abs, tag = 'sflag constant byte address 0x0 - dummy sync flag']
  #allocation36 [shape = 's32[]', space=sflag, size = 0x4, offset = 0, fixed_abs, tag = 'sflag constant byte address 0x0 - dummy sync flag']
  #allocation37 [shape = 's32[]', space=sflag, size = 0x4, offset = 0, fixed_abs, tag = 'sflag constant byte address 0x0 - dummy sync flag']
  #allocation38 [shape = 's32[]', space=sflag, size = 0x4, offset = 0, fixed_abs, tag = 'sflag constant byte address 0x0 - dummy sync flag']
  #allocation39 [shape = 's32[]', space=sflag, size = 0x4, offset = 0, fixed_abs, tag = 'sflag constant byte address 0x0 - dummy sync flag']
  #allocation40 [shape = 's32[]', space=sflag, size = 0x4, offset = 0, fixed_abs, tag = 'sflag constant byte address 0x0 - dummy sync flag']
  #allocation41 [shape = 's32[]', space=sflag, size = 0x4, offset = 0, fixed_abs, tag = 'sflag constant byte address 0x0 - dummy sync flag']
  #allocation42 [shape = 's32[]', space=sflag, size = 0x4, offset = 0, fixed_abs, tag = 'sflag constant byte address 0x0 - dummy sync flag']
  #allocation43 [shape = 's32[]', space=sflag, size = 0x4, offset = 0, fixed_abs, tag = 'sflag constant byte address 0x0 - dummy sync flag']
  %s0 = inlined_call_operand.hbm [shape: s32[16], index: 0, kind: input, shape index: {}]
  %s1 = inlined_call_operand.hbm [shape: f32[64,128], index: 1, kind: input, shape index: {}]
  %s2 = inlined_call_operand.hbm [shape: f32[128,128], index: 2, kind: input, shape index: {}]
  %s3 = inlined_call_operand.hbm [shape: f32[16,128], index: 3, kind: output, shape index: {}]
  %s4 = sld [smem:[#allocation0]]
  $region82: #{tpu_custom_call.1} parent=0
    _
  %s6 = ssub.s32 1, %s4
  %s7 = scalar_select 0, %s6, %s4
  %s9 = sshll.u32 %s0, 4
  %s10 = int_to_ptr.hbm [resolvable:$true] %s9
  %12 = dma.hbm_to_smem %s10, 16, [#allocation5], [#allocation4]
  %14 = dma.done [#allocation4], 16
  %15 = sfence
  $region1: #{tpu_custom_call.1} parent=0
    #allocation6 [shape = 'u8[65536]{0}', space=vmem, size = 0x10000, scoped, tag = 'input window, operand 2, single buffered']
    #allocation7 [shape = 's32[1]{0}', space=sflag, size = 0x4, scoped, tag = 'scoped memory for tpu_custom_call.1']
    #allocation8 [shape = 's32[1]{0}', space=sflag, size = 0x4, scoped, tag = 'scoped memory for tpu_custom_call.1']
    #allocation9 [shape = 'u8[8192]{0}', space=vmem, size = 0x2000, scoped, tag = 'output window, operand 0, single buffered']
    %16 = vsyncpa [#allocation7], 0
    %17 = vsyncpa [#allocation8], 0
    // Predicated region
    $region2: #{tpu_custom_call.1} parent=1 // pred_check
      _
    $region3: #{tpu_custom_call.1} parent=1 // pred_check_branch
      %19 = sbr.rel (0) target = $region5
    $region4: #{tpu_custom_call.1} parent=1 // pred_region
      %21 = vsyncadd [#allocation7], 0
      %s22 = sshll.u32 %s2, 4
      %s23 = int_to_ptr.hbm [resolvable:$true] %s22
      %s24 = sshll.u32 [#allocation6], 4
      %s25 = int_to_ptr.vmem [resolvable:$true] %s24
      %30 = dma.hbm_to_vmem [thread:$0]  %s23, 2048, %s25, [#allocation7], 128, 128, 8
    $region5: #{tpu_custom_call.1} parent=1 // pred_fallthru
      _
    // Predicated region
    $region6: #{tpu_custom_call.1} parent=1 // pred_check
      _
    $region7: #{tpu_custom_call.1} parent=1 // pred_check_branch
      %32 = sbr.rel (0) target = $region9
    $region8: #{tpu_custom_call.1} parent=1 // pred_region
      %34 = dma.done [#allocation7], 2048
    $region9: #{tpu_custom_call.1} parent=1 // pred_fallthru
      _
    %s35 = smul.u32 0, 16
    %s36 = sld [smem:[#allocation5 + %s35]]
    %s37 = scalar_lea.hbm %s1, %s36
    // Predicated region
    $region10: #{tpu_custom_call.1} parent=1 // pred_check
      _
    $region11: #{tpu_custom_call.1} parent=1 // pred_check_branch
      %39 = sbr.rel target = $region13
    $region12: #{tpu_custom_call.1} parent=1 // pred_region
      %40 = sst [smem:[#allocation12]] [#allocation11]
      %41 = sst [smem:[#allocation13]] [#allocation10]
    $region13: #{tpu_custom_call.1} parent=1 // pred_fallthru
      _
    %43 = shalt.err (0)
    %s45 = sshll.u32 %s37, 4
    %s46 = int_to_ptr.hbm [resolvable:$true] %s45
    %s47 = sshll.u32 [#allocation2], 4
    %s48 = int_to_ptr.vmem [resolvable:$true] %s47
    %50 = dma.hbm_to_vmem [thread:$0]  %s46, 16, %s48, [#allocation3]
    %s51 = sadd.s32 %s35, 1
    %s52 = sld [smem:[#allocation5 + %s51]]
    %s53 = scalar_lea.hbm %s1, %s52
    %s54 = scalar_lea.vmem [#allocation2], 1
    // Predicated region
    $region14: #{tpu_custom_call.1} parent=1 // pred_check
      _
    $region15: #{tpu_custom_call.1} parent=1 // pred_check_branch
      %56 = sbr.rel target = $region17
    $region16: #{tpu_custom_call.1} parent=1 // pred_region
      %57 = sst [smem:[#allocation12]] [#allocation15]
      %58 = sst [smem:[#allocation13]] [#allocation14]
    $region17: #{tpu_custom_call.1} parent=1 // pred_fallthru
      _
    %60 = shalt.err (0)
    %s62 = sshll.u32 %s53, 4
    %s63 = int_to_ptr.hbm [resolvable:$true] %s62
    %s64 = sshll.u32 %s54, 4
    %s65 = int_to_ptr.vmem [resolvable:$true] %s64
    %67 = dma.hbm_to_vmem [thread:$0]  %s63, 16, %s65, [#allocation3]
    %s68 = sadd.s32 %s35, 2
    %s69 = sld [smem:[#allocation5 + %s68]]
    %s70 = scalar_lea.hbm %s1, %s69
    %s71 = scalar_lea.vmem [#allocation2], 2
    // Predicated region
    $region18: #{tpu_custom_call.1} parent=1 // pred_check
      _
    $region19: #{tpu_custom_call.1} parent=1 // pred_check_branch
      %73 = sbr.rel target = $region21
    $region20: #{tpu_custom_call.1} parent=1 // pred_region
      %74 = sst [smem:[#allocation12]] [#allocation17]
      %75 = sst [smem:[#allocation13]] [#allocation16]
    $region21: #{tpu_custom_call.1} parent=1 // pred_fallthru
      _
    %77 = shalt.err (0)
    %s79 = sshll.u32 %s70, 4
    %s80 = int_to_ptr.hbm [resolvable:$true] %s79
    %s81 = sshll.u32 %s71, 4
    %s82 = int_to_ptr.vmem [resolvable:$true] %s81
    %84 = dma.hbm_to_vmem [thread:$0]  %s80, 16, %s82, [#allocation3]
    %s85 = sadd.s32 %s35, 3
    %s86 = sld [smem:[#allocation5 + %s85]]
    %s87 = scalar_lea.hbm %s1, %s86
    %s88 = scalar_lea.vmem [#allocation2], 3
    // Predicated region
    $region22: #{tpu_custom_call.1} parent=1 // pred_check
      _
    $region23: #{tpu_custom_call.1} parent=1 // pred_check_branch
      %90 = sbr.rel target = $region25
    $region24: #{tpu_custom_call.1} parent=1 // pred_region
      %91 = sst [smem:[#allocation12]] [#allocation19]
      %92 = sst [smem:[#allocation13]] [#allocation18]
    $region25: #{tpu_custom_call.1} parent=1 // pred_fallthru
      _
    %94 = shalt.err (0)
    %s96 = sshll.u32 %s87, 4
    %s97 = int_to_ptr.hbm [resolvable:$true] %s96
    %s98 = sshll.u32 %s88, 4
    %s99 = int_to_ptr.vmem [resolvable:$true] %s98
    %101 = dma.hbm_to_vmem [thread:$0]  %s97, 16, %s99, [#allocation3]
    %s102 = sadd.s32 %s35, 4
    %s103 = sld [smem:[#allocation5 + %s102]]
    %s104 = scalar_lea.hbm %s1, %s103
    %s105 = scalar_lea.vmem [#allocation2], 4
    // Predicated region
    $region26: #{tpu_custom_call.1} parent=1 // pred_check
      _
    $region27: #{tpu_custom_call.1} parent=1 // pred_check_branch
      %107 = sbr.rel target = $region29
    $region28: #{tpu_custom_call.1} parent=1 // pred_region
      %108 = sst [smem:[#allocation12]] [#allocation21]
      %109 = sst [smem:[#allocation13]] [#allocation20]
    $region29: #{tpu_custom_call.1} parent=1 // pred_fallthru
      _
    %111 = shalt.err (0)
    %s113 = sshll.u32 %s104, 4
    %s114 = int_to_ptr.hbm [resolvable:$true] %s113
    %s115 = sshll.u32 %s105, 4
    %s116 = int_to_ptr.vmem [resolvable:$true] %s115
    %118 = dma.hbm_to_vmem [thread:$0]  %s114, 16, %s116, [#allocation3]
    %s119 = sadd.s32 %s35, 5
    %s120 = sld [smem:[#allocation5 + %s119]]
    %s121 = scalar_lea.hbm %s1, %s120
    %s122 = scalar_lea.vmem [#allocation2], 5
    // Predicated region
    $region30: #{tpu_custom_call.1} parent=1 // pred_check
      _
    $region31: #{tpu_custom_call.1} parent=1 // pred_check_branch
      %124 = sbr.rel target = $region33
    $region32: #{tpu_custom_call.1} parent=1 // pred_region
      %125 = sst [smem:[#allocation12]] [#allocation23]
      %126 = sst [smem:[#allocation13]] [#allocation22]
    $region33: #{tpu_custom_call.1} parent=1 // pred_fallthru
      _
    %128 = shalt.err (0)
    %s130 = sshll.u32 %s121, 4
    %s131 = int_to_ptr.hbm [resolvable:$true] %s130
    %s132 = sshll.u32 %s122, 4
    %s133 = int_to_ptr.vmem [resolvable:$true] %s132
    %135 = dma.hbm_to_vmem [thread:$0]  %s131, 16, %s133, [#allocation3]
    %s136 = sadd.s32 %s35, 6
    %s137 = sld [smem:[#allocation5 + %s136]]
    %s138 = scalar_lea.hbm %s1, %s137
    %s139 = scalar_lea.vmem [#allocation2], 6
    // Predicated region
    $region34: #{tpu_custom_call.1} parent=1 // pred_check
      _
    $region35: #{tpu_custom_call.1} parent=1 // pred_check_branch
      %141 = sbr.rel target = $region37
    $region36: #{tpu_custom_call.1} parent=1 // pred_region
      %142 = sst [smem:[#allocation12]] [#allocation25]
      %143 = sst [smem:[#allocation13]] [#allocation24]
    $region37: #{tpu_custom_call.1} parent=1 // pred_fallthru
      _
    %145 = shalt.err (0)
    %s147 = sshll.u32 %s138, 4
    %s148 = int_to_ptr.hbm [resolvable:$true] %s147
    %s149 = sshll.u32 %s139, 4
    %s150 = int_to_ptr.vmem [resolvable:$true] %s149
    %152 = dma.hbm_to_vmem [thread:$0]  %s148, 16, %s150, [#allocation3]
    %s153 = sadd.s32 %s35, 7
    %s154 = sld [smem:[#allocation5 + %s153]]
    %s155 = scalar_lea.hbm %s1, %s154
    %s156 = scalar_lea.vmem [#allocation2], 7
    // Predicated region
    $region38: #{tpu_custom_call.1} parent=1 // pred_check
      _
    $region39: #{tpu_custom_call.1} parent=1 // pred_check_branch
      %158 = sbr.rel target = $region41
    $region40: #{tpu_custom_call.1} parent=1 // pred_region
      %159 = sst [smem:[#allocation12]] [#allocation27]
      %160 = sst [smem:[#allocation13]] [#allocation26]
    $region41: #{tpu_custom_call.1} parent=1 // pred_fallthru
      _
    %162 = shalt.err (0)
    %s164 = sshll.u32 %s155, 4
    %s165 = int_to_ptr.hbm [resolvable:$true] %s164
    %s166 = sshll.u32 %s156, 4
    %s167 = int_to_ptr.vmem [resolvable:$true] %s166
    %169 = dma.hbm_to_vmem [thread:$0]  %s165, 16, %s167, [#allocation3]
    %s170 = sadd.s32 %s35, 8
    %s171 = sld [smem:[#allocation5 + %s170]]
    %s172 = scalar_lea.hbm %s1, %s171
    %s173 = scalar_lea.vmem [#allocation2], 8
    // Predicated region
    $region42: #{tpu_custom_call.1} parent=1 // pred_check
      _
    $region43: #{tpu_custom_call.1} parent=1 // pred_check_branch
      %175 = sbr.rel target = $region45
    $region44: #{tpu_custom_call.1} parent=1 // pred_region
      %176 = sst [smem:[#allocation12]] [#allocation29]
      %177 = sst [smem:[#allocation13]] [#allocation28]
    $region45: #{tpu_custom_call.1} parent=1 // pred_fallthru
      _
    %179 = shalt.err (0)
    %s181 = sshll.u32 %s172, 4
    %s182 = int_to_ptr.hbm [resolvable:$true] %s181
    %s183 = sshll.u32 %s173, 4
    %s184 = int_to_ptr.vmem [resolvable:$true] %s183
    %186 = dma.hbm_to_vmem [thread:$0]  %s182, 16, %s184, [#allocation3]
    %s187 = sadd.s32 %s35, 9
    %s188 = sld [smem:[#allocation5 + %s187]]
    %s189 = scalar_lea.hbm %s1, %s188
    %s190 = scalar_lea.vmem [#allocation2], 9
    // Predicated region
    $region46: #{tpu_custom_call.1} parent=1 // pred_check
      _
    $region47: #{tpu_custom_call.1} parent=1 // pred_check_branch
      %192 = sbr.rel target = $region49
    $region48: #{tpu_custom_call.1} parent=1 // pred_region
      %193 = sst [smem:[#allocation12]] [#allocation31]
      %194 = sst [smem:[#allocation13]] [#allocation30]
    $region49: #{tpu_custom_call.1} parent=1 // pred_fallthru
      _
    %196 = shalt.err (0)
    %s198 = sshll.u32 %s189, 4
    %s199 = int_to_ptr.hbm [resolvable:$true] %s198
    %s200 = sshll.u32 %s190, 4
    %s201 = int_to_ptr.vmem [resolvable:$true] %s200
    %203 = dma.hbm_to_vmem [thread:$0]  %s199, 16, %s201, [#allocation3]
    %s204 = sadd.s32 %s35, 10
    %s205 = sld [smem:[#allocation5 + %s204]]
    %s206 = scalar_lea.hbm %s1, %s205
    %s207 = scalar_lea.vmem [#allocation2], 10
    // Predicated region
    $region50: #{tpu_custom_call.1} parent=1 // pred_check
      _
    $region51: #{tpu_custom_call.1} parent=1 // pred_check_branch
      %209 = sbr.rel target = $region53
    $region52: #{tpu_custom_call.1} parent=1 // pred_region
      %210 = sst [smem:[#allocation12]] [#allocation33]
      %211 = sst [smem:[#allocation13]] [#allocation32]
    $region53: #{tpu_custom_call.1} parent=1 // pred_fallthru
      _
    %213 = shalt.err (0)
    %s215 = sshll.u32 %s206, 4
    %s216 = int_to_ptr.hbm [resolvable:$true] %s215
    %s217 = sshll.u32 %s207, 4
    %s218 = int_to_ptr.vmem [resolvable:$true] %s217
    %220 = dma.hbm_to_vmem [thread:$0]  %s216, 16, %s218, [#allocation3]
    %s221 = sadd.s32 %s35, 11
    %s222 = sld [smem:[#allocation5 + %s221]]
    %s223 = scalar_lea.hbm %s1, %s222
    %s224 = scalar_lea.vmem [#allocation2], 11
    // Predicated region
    $region54: #{tpu_custom_call.1} parent=1 // pred_check
      _
    $region55: #{tpu_custom_call.1} parent=1 // pred_check_branch
      %226 = sbr.rel target = $region57
    $region56: #{tpu_custom_call.1} parent=1 // pred_region
      %227 = sst [smem:[#allocation12]] [#allocation35]
      %228 = sst [smem:[#allocation13]] [#allocation34]
    $region57: #{tpu_custom_call.1} parent=1 // pred_fallthru
      _
    %230 = shalt.err (0)
    %s232 = sshll.u32 %s223, 4
    %s233 = int_to_ptr.hbm [resolvable:$true] %s232
    %s234 = sshll.u32 %s224, 4
    %s235 = int_to_ptr.vmem [resolvable:$true] %s234
    %237 = dma.hbm_to_vmem [thread:$0]  %s233, 16, %s235, [#allocation3]
    %s238 = sadd.s32 %s35, 12
    %s239 = sld [smem:[#allocation5 + %s238]]
    %s240 = scalar_lea.hbm %s1, %s239
    %s241 = scalar_lea.vmem [#allocation2], 12
    // Predicated region
    $region58: #{tpu_custom_call.1} parent=1 // pred_check
      _
    $region59: #{tpu_custom_call.1} parent=1 // pred_check_branch
      %243 = sbr.rel target = $region61
    $region60: #{tpu_custom_call.1} parent=1 // pred_region
      %244 = sst [smem:[#allocation12]] [#allocation37]
      %245 = sst [smem:[#allocation13]] [#allocation36]
    $region61: #{tpu_custom_call.1} parent=1 // pred_fallthru
      _
    %247 = shalt.err (0)
    %s249 = sshll.u32 %s240, 4
    %s250 = int_to_ptr.hbm [resolvable:$true] %s249
    %s251 = sshll.u32 %s241, 4
    %s252 = int_to_ptr.vmem [resolvable:$true] %s251
    %254 = dma.hbm_to_vmem [thread:$0]  %s250, 16, %s252, [#allocation3]
    %s255 = sadd.s32 %s35, 13
    %s256 = sld [smem:[#allocation5 + %s255]]
    %s257 = scalar_lea.hbm %s1, %s256
    %s258 = scalar_lea.vmem [#allocation2], 13
    // Predicated region
    $region62: #{tpu_custom_call.1} parent=1 // pred_check
      _
    $region63: #{tpu_custom_call.1} parent=1 // pred_check_branch
      %260 = sbr.rel target = $region65
    $region64: #{tpu_custom_call.1} parent=1 // pred_region
      %261 = sst [smem:[#allocation12]] [#allocation39]
      %262 = sst [smem:[#allocation13]] [#allocation38]
    $region65: #{tpu_custom_call.1} parent=1 // pred_fallthru
      _
    %264 = shalt.err (0)
    %s266 = sshll.u32 %s257, 4
    %s267 = int_to_ptr.hbm [resolvable:$true] %s266
    %s268 = sshll.u32 %s258, 4
    %s269 = int_to_ptr.vmem [resolvable:$true] %s268
    %271 = dma.hbm_to_vmem [thread:$0]  %s267, 16, %s269, [#allocation3]
    %s272 = sadd.s32 %s35, 14
    %s273 = sld [smem:[#allocation5 + %s272]]
    %s274 = scalar_lea.hbm %s1, %s273
    %s275 = scalar_lea.vmem [#allocation2], 14
    // Predicated region
    $region66: #{tpu_custom_call.1} parent=1 // pred_check
      _
    $region67: #{tpu_custom_call.1} parent=1 // pred_check_branch
      %277 = sbr.rel target = $region69
    $region68: #{tpu_custom_call.1} parent=1 // pred_region
      %278 = sst [smem:[#allocation12]] [#allocation41]
      %279 = sst [smem:[#allocation13]] [#allocation40]
    $region69: #{tpu_custom_call.1} parent=1 // pred_fallthru
      _
    %281 = shalt.err (0)
    %s283 = sshll.u32 %s274, 4
    %s284 = int_to_ptr.hbm [resolvable:$true] %s283
    %s285 = sshll.u32 %s275, 4
    %s286 = int_to_ptr.vmem [resolvable:$true] %s285
    %288 = dma.hbm_to_vmem [thread:$0]  %s284, 16, %s286, [#allocation3]
    %s289 = sadd.s32 %s35, 15
    %s290 = sld [smem:[#allocation5 + %s289]]
    %s291 = scalar_lea.hbm %s1, %s290
    %s292 = scalar_lea.vmem [#allocation2], 15
    // Predicated region
    $region70: #{tpu_custom_call.1} parent=1 // pred_check
      _
    $region71: #{tpu_custom_call.1} parent=1 // pred_check_branch
      %294 = sbr.rel target = $region73
    $region72: #{tpu_custom_call.1} parent=1 // pred_region
      %295 = sst [smem:[#allocation12]] [#allocation43]
      %296 = sst [smem:[#allocation13]] [#allocation42]
    $region73: #{tpu_custom_call.1} parent=1 // pred_fallthru
      _
    %298 = shalt.err (0)
    %s300 = sshll.u32 %s291, 4
    %s301 = int_to_ptr.hbm [resolvable:$true] %s300
    %s302 = sshll.u32 %s292, 4
    %s303 = int_to_ptr.vmem [resolvable:$true] %s302
    %305 = dma.hbm_to_vmem [thread:$0]  %s301, 16, %s303, [#allocation3]
    %s306 = smul.u32 1, 1
    %s307 = sshll.u32 %s306, 4
    %308 = dma.done [#allocation3], %s307
    %s309 = sshll.u32 %s306, 4
    %310 = dma.done [#allocation3], %s309
    %s311 = sshll.u32 %s306, 4
    %312 = dma.done [#allocation3], %s311
    %s313 = sshll.u32 %s306, 4
    %314 = dma.done [#allocation3], %s313
    %s315 = sshll.u32 %s306, 4
    %316 = dma.done [#allocation3], %s315
    %s317 = sshll.u32 %s306, 4
    %318 = dma.done [#allocation3], %s317
    %s319 = sshll.u32 %s306, 4
    %320 = dma.done [#allocation3], %s319
    %s321 = sshll.u32 %s306, 4
    %322 = dma.done [#allocation3], %s321
    %s323 = sshll.u32 %s306, 4
    %324 = dma.done [#allocation3], %s323
    %s325 = sshll.u32 %s306, 4
    %326 = dma.done [#allocation3], %s325
    %s327 = sshll.u32 %s306, 4
    %328 = dma.done [#allocation3], %s327
    %s329 = sshll.u32 %s306, 4
    %330 = dma.done [#allocation3], %s329
    %s331 = sshll.u32 %s306, 4
    %332 = dma.done [#allocation3], %s331
    %s333 = sshll.u32 %s306, 4
    %334 = dma.done [#allocation3], %s333
    %s335 = sshll.u32 %s306, 4
    %336 = dma.done [#allocation3], %s335
    %s337 = sshll.u32 %s306, 4
    %338 = dma.done [#allocation3], %s337
    %v339 = vld [vmem:[#allocation2] sm:$0xff]
    %v340 = vld [vmem:[#allocation2 + $0x8] sm:$0xff]
    %v341 = vld [vmem:[#allocation6] sm:$0xff]
    %v342 = vld [vmem:[#allocation6 + $0x8] sm:$0xff]
    %v343 = vld [vmem:[#allocation6 + $0x10] sm:$0xff]
    %v344 = vld [vmem:[#allocation6 + $0x18] sm:$0xff]
    %v345 = vld [vmem:[#allocation6 + $0x20] sm:$0xff]
    %v346 = vld [vmem:[#allocation6 + $0x28] sm:$0xff]
    %v347 = vld [vmem:[#allocation6 + $0x30] sm:$0xff]
    %v348 = vld [vmem:[#allocation6 + $0x38] sm:$0xff]
    %v349 = vld [vmem:[#allocation6 + $0x40] sm:$0xff]
    %v350 = vld [vmem:[#allocation6 + $0x48] sm:$0xff]
    %v351 = vld [vmem:[#allocation6 + $0x50] sm:$0xff]
    %v352 = vld [vmem:[#allocation6 + $0x58] sm:$0xff]
    %v353 = vld [vmem:[#allocation6 + $0x60] sm:$0xff]
    %v354 = vld [vmem:[#allocation6 + $0x68] sm:$0xff]
    %v355 = vld [vmem:[#allocation6 + $0x70] sm:$0xff]
    %v356 = vld [vmem:[#allocation6 + $0x78] sm:$0xff]
    %357 = vmatpush.msra.mxu0 %v356
    %358 = vmatpush.msra.mxu0 %v355
    %359 = vmatpush.msra.mxu0 %v354
    %360 = vmatpush.msra.mxu0 %v353
    %361 = vmatpush.msra.mxu0 %v352
    %362 = vmatpush.msra.mxu0 %v351
    %363 = vmatpush.msra.mxu0 %v350
    %364 = vmatpush.msra.mxu0 %v349
    %365 = vmatpush.msra.mxu0 %v348
    %366 = vmatpush.msra.mxu0 %v347
    %367 = vmatpush.msra.mxu0 %v346
    %368 = vmatpush.msra.mxu0 %v345
    %369 = vmatpush.msra.mxu0 %v344
    %370 = vmatpush.msra.mxu0 %v343
    %371 = vmatpush.msra.mxu0 %v342
    %372 = vmatpush.msra.mxu0 %v341
    %373 = vmatmul.f32.gmra.mxu0 %v339
    %v374 = vpop.f32.mrf.mxu0
    %v375 = vadd.f32 0.0, %v374
    %376 = vmatmul.f32.gmra.mxu0 %v340
    %v377 = vpop.f32.mrf.mxu0
    %v378 = vadd.f32 0.0, %v377
    %379 = vdwg.mxu0
    %380 = vst [vmem:[#allocation9] sm:$0xff] %v375
    %381 = vst [vmem:[#allocation9 + $0x8] sm:$0xff] %v378
    // Predicated region
    $region74: #{tpu_custom_call.1} parent=1 // pred_check
      _
    $region75: #{tpu_custom_call.1} parent=1 // pred_check_branch
      %383 = sbr.rel (0) target = $region77
    $region76: #{tpu_custom_call.1} parent=1 // pred_region
      %385 = vsyncadd [#allocation8], 0
      %s386 = sshll.u32 [#allocation9], 4
      %s387 = int_to_ptr.vmem [resolvable:$true] %s386
      %s388 = sshll.u32 %s3, 4
      %s389 = int_to_ptr.hbm [resolvable:$true] %s388
      %394 = dma.vmem_to_hbm [thread:$0]  %s387, 256, %s389, [#allocation8], 128, 128, 8
    $region77: #{tpu_custom_call.1} parent=1 // pred_fallthru
      _
    // Predicated region
    $region78: #{tpu_custom_call.1} parent=1 // pred_check
      _
    $region79: #{tpu_custom_call.1} parent=1 // pred_check_branch
      %396 = sbr.rel (0) target = $region81
    $region80: #{tpu_custom_call.1} parent=1 // pred_region
      %398 = dma.done [#allocation8], 256
    $region81: #{tpu_custom_call.1} parent=1 // pred_fallthru
      _
    %399 = vsyncpa [#allocation7], 1
    %400 = vsyncpa [#allocation8], 1
  %401 = vsyncmov [#allocation3]
  %s402 = vpop.sfrf %401
  %p403 = scmp.eq.s32.totalorder %s402, 0
  %p404 = pneg %p403
  %406 = shalt.err (%p404)
  %s407 = scalar_lea.sflag [#allocation3], 1
  %408 = vsyncmov %s407
  %s409 = vpop.sfrf %408
  %p410 = scmp.eq.s32.totalorder %s409, 0
  %p411 = pneg %p410
  %413 = shalt.err (%p411)

</llo_original>
